<compile_context>
chip_gen: v7x
topology: tpu7x:2x2x1
jax: 0.10.0
libtpu: 0.0.40
codegen_flags: <defaults>
</compile_context>

<pallas_src>
import functools

import jax
import jax.numpy as jnp
from jax import lax
from jax.experimental import pallas as pl
from jax.experimental.pallas import tpu as pltpu

MARGIN = 0.1
EPS = 1e-6          # torch.nn.PairwiseDistance default (added to the diff)
_LANES = 128
_SUBLANES = 8


def _multi_triplet_kernel(user_ref, pos_ref, neg_ref, out_ref, d_ap_ref, *,
                          margin, eps, batch_size, block_b):
    """One grid step: batch tile `bi` (on lanes) x negative index `ni`.

    Layouts (batch lane-dense, D on sublanes):
      user_ref, pos_ref : (D, block_b)
      neg_ref           : (D, block_b)      one negative (leading dim squeezed)
      out_ref           : (_SUBLANES, block_b)  per-sample hinge sums in row 0
      d_ap_ref          : (1, block_b)      cached anchor-positive distance
    """
    bi = pl.program_id(0)
    ni = pl.program_id(1)

    a = user_ref[...].astype(jnp.float32)                      # (D, block_b)

    # First negative of this batch tile: init accumulator + cache d(a, p).
    @pl.when(ni == 0)
    def _():
        p = pos_ref[...].astype(jnp.float32)
        d_ap_ref[...] = jnp.sqrt(
            jnp.sum((a - p + eps) ** 2, axis=0, keepdims=True))
        out_ref[...] = jnp.zeros_like(out_ref)

    n = neg_ref[...].astype(jnp.float32)                       # (D, block_b)
    d_an = jnp.sqrt(jnp.sum((a - n + eps) ** 2, axis=0, keepdims=True))

    hinge = jnp.maximum(d_ap_ref[...] - d_an + margin, 0.0)    # (1, block_b)

    # Mask padded batch lanes (they would otherwise contribute `margin`).
    lane = lax.broadcasted_iota(jnp.int32, (1, block_b), 1)
    valid = (bi * block_b + lane) < batch_size
    hinge = jnp.where(valid, hinge, 0.0)

    out_ref[0:1, :] += hinge


def multi_triplet_loss(user_emb, cands_pos, cands_neg, margin=MARGIN,
                       eps=EPS, block_b=None):
    """user_emb, cands_pos: (B, D); cands_neg: (B, N_NEG, D)."""
    B, D = user_emb.shape
    n_neg = cands_neg.shape[1]

    if block_b is None:
        # Default batch tile.  On v5e/v6e (128 MiB VMEM) larger tiles
        # (1024-2048) amortize per-step overhead further; on v7x (64 MiB)
        # keep tiles roughly half as big.  vmem_limit below scales with it.
        block_b = min(512, pl.cdiv(B, _LANES) * _LANES)
    block_b = max(_LANES, (block_b // _LANES) * _LANES)

    b_pad = pl.cdiv(B, block_b) * block_b
    num_b_tiles = b_pad // block_b

    # Lane-dense layout: batch on lanes, embedding dim on sublanes.
    user_t = jnp.transpose(user_emb, (1, 0))                   # (D, B)
    pos_t = jnp.transpose(cands_pos, (1, 0))                   # (D, B)
    neg_t = jnp.transpose(cands_neg, (1, 2, 0))                # (N_NEG, D, B)

    if b_pad != B:
        user_t = jnp.pad(user_t, ((0, 0), (0, b_pad - B)))
        pos_t = jnp.pad(pos_t, ((0, 0), (0, b_pad - B)))
        neg_t = jnp.pad(neg_t, ((0, 0), (0, 0), (0, b_pad - B)))

    kernel = functools.partial(_multi_triplet_kernel, margin=margin, eps=eps,
                               batch_size=B, block_b=block_b)

    # VMEM budget: double-buffered input/output blocks + scratch, with headroom.
    itemsize = jnp.dtype(user_emb.dtype).itemsize
    blk_bytes = (3 * D * block_b * itemsize            # user + pos + neg tiles
                 + _SUBLANES * block_b * 4)            # output tile (f32)
    vmem_needed = 2 * blk_bytes + block_b * 4
    vmem_limit = int(min(max(3 * vmem_needed, 16 << 20), 64 << 20))

    grid_spec = pltpu.PrefetchScalarGridSpec(
        num_scalar_prefetch=0,
        grid=(num_b_tiles, n_neg),
        in_specs=[
            pl.BlockSpec((D, block_b), lambda bi, ni: (0, bi)),        # user
            pl.BlockSpec((D, block_b), lambda bi, ni: (0, bi)),        # pos
            pl.BlockSpec((None, D, block_b), lambda bi, ni: (ni, 0, bi)),  # neg
        ],
        out_specs=pl.BlockSpec((_SUBLANES, block_b), lambda bi, ni: (0, bi)),
        scratch_shapes=[pltpu.VMEM((1, block_b), jnp.float32)],
    )

    partials = pl.pallas_call(
        kernel,
        out_shape=jax.ShapeDtypeStruct((_SUBLANES, b_pad), jnp.float32),
        grid_spec=grid_spec,
        compiler_params=pltpu.CompilerParams(
            dimension_semantics=("parallel", "arbitrary"),
            vmem_limit_bytes=vmem_limit),
    )(user_t, pos_t, neg_t)

    # sum over negatives of mean over batch  ==  total hinge sum / B
    return jnp.sum(partials) / jnp.float32(B)


def _reference_loss(user_emb, cands_pos, cands_neg, margin=MARGIN):
    """Pure-JAX reference mirroring the torch.nn.TripletMarginLoss loop."""
    loss = 0.0
    for i in range(cands_neg.shape[1]):
        neg = cands_neg[:, i, :]
        d_ap = jnp.sqrt(jnp.sum((user_emb - cands_pos + EPS) ** 2, axis=-1))
        d_an = jnp.sqrt(jnp.sum((user_emb - neg + EPS) ** 2, axis=-1))
        loss += jnp.mean(jnp.maximum(d_ap - d_an + margin, 0.0))
    return loss


if __name__ == "__main__":
    # Small shapes consistent with the module's forward.
    B = 2                       # number of samples (users)
    D = 32                      # embedding dim
    N_CANDS_PER_SAMPLE = 4      # 1 positive + 3 negatives per sample

    key = jax.random.PRNGKey(0)
    k_user, k_cand = jax.random.split(key)

    # users_cands_pair[0]
    user_emb = jax.random.normal(k_user, (B, D), dtype=jnp.float32)

    # users_cands_pair[1]: list of per-sample candidate blocks, then vstack.
    cand_list = [
        jax.random.normal(jax.random.fold_in(k_cand, i),
                          (N_CANDS_PER_SAMPLE, D), dtype=jnp.float32)
        for i in range(B)
    ]
    cand_embs = jnp.vstack(cand_list)                       # (B * n_cands, D)

    # targets: first candidate of each sample is the positive.
    targets = jnp.tile(
        jnp.array([1] + [0] * (N_CANDS_PER_SAMPLE - 1), dtype=jnp.int32), B
    )                                                       # (B * n_cands,)

    # Glue (eager, data-dependent selection — same as the torch forward).
    cands_pos = cand_embs[targets == 1]                     # (B, D)
    cands_neg = cand_embs[targets == 0].reshape(
        cands_pos.shape[0], -1, cands_pos.shape[1]
    )                                                       # (B, N_NEG, D)

    loss = multi_triplet_loss(user_emb, cands_pos, cands_neg)
    loss = jax.block_until_ready(loss)

    ref = _reference_loss(user_emb, cands_pos, cands_neg)
    assert jnp.allclose(loss, ref, rtol=1e-5, atol=1e-5), (loss, ref)

    print("KERNEL_OK")
</pallas_src>

<mosaic_0001>
module attributes {stable_mosaic.version = 11 : i64} {
  func.func @_multi_triplet_kernel(%arg0: i32, %arg1: i32, %arg2: memref<32x128xf32, #tpu.memory_space<vmem>>, %arg3: memref<32x128xf32, #tpu.memory_space<vmem>>, %arg4: memref<1x32x128xf32, #tpu.memory_space<vmem>>, %arg5: memref<8x128xf32, #tpu.memory_space<vmem>>, %arg6: memref<1x128xf32, #tpu.memory_space<vmem>>) attributes {dimension_semantics = [#tpu.dimension_semantics<parallel>, #tpu.dimension_semantics<arbitrary>], iteration_bounds = array<i64: 1, 3>, scalar_prefetch = 0 : i64, scratch_operands = 1 : i64, tpu.core_type = #tpu.core_type<tc>, window_params = [{transform_indices = @transform_0, window_bounds = array<i64: 32, 128>}, {transform_indices = @transform_1, window_bounds = array<i64: 32, 128>}, {transform_indices = @transform_2, window_bounds = array<i64: 1, 32, 128>}, {transform_indices = @transform_3, window_bounds = array<i64: 8, 128>}]} {
    %c0 = arith.constant 0 : index
    %c0_0 = arith.constant 0 : index
    %0 = vector.load %arg2[%c0, %c0_0] : memref<32x128xf32, #tpu.memory_space<vmem>>, vector<32x128xf32>
    %c0_i32 = arith.constant 0 : i32
    %1 = arith.cmpi eq, %arg1, %c0_i32 : i32
    %2 = arith.extui %1 : i1 to i32
    %c0_i32_1 = arith.constant 0 : i32
    %3 = arith.cmpi ne, %2, %c0_i32_1 : i32
    scf.if %3 {
      %c0_15 = arith.constant 0 : index
      %c0_16 = arith.constant 0 : index
      %30 = vector.load %arg3[%c0_15, %c0_16] : memref<32x128xf32, #tpu.memory_space<vmem>>, vector<32x128xf32>
      %31 = arith.subf %0, %30 : vector<32x128xf32>
      %cst_17 = arith.constant 9.99999997E-7 : f32
      %32 = vector.broadcast %cst_17 : f32 to vector<32x128xf32>
      %33 = arith.addf %31, %32 : vector<32x128xf32>
      %34 = arith.mulf %33, %33 : vector<32x128xf32>
      %cst_18 = arith.constant dense<0.000000e+00> : vector<128xf32>
      %35 = vector.multi_reduction <add>, %34, %cst_18 [0] : vector<32x128xf32> to vector<128xf32>
      %36 = vector.shape_cast %35 : vector<128xf32> to vector<1x128xf32>
      %37 = math.sqrt %36 : vector<1x128xf32>
      %c0_19 = arith.constant 0 : index
      %c0_20 = arith.constant 0 : index
      %38 = vector.load %arg6[%c0_19, %c0_20] : memref<1x128xf32, #tpu.memory_space<vmem>>, vector<1x128xf32>
      tpu.vector_store %arg6[%c0_19, %c0_20], %37 {strides = array<i32>} : memref<1x128xf32, #tpu.memory_space<vmem>>, vector<1x128xf32>,
      %cst_21 = arith.constant 0.000000e+00 : f32
      %39 = vector.broadcast %cst_21 : f32 to vector<8x128xf32>
      %c0_22 = arith.constant 0 : index
      %c0_23 = arith.constant 0 : index
      %40 = vector.load %arg5[%c0_22, %c0_23] : memref<8x128xf32, #tpu.memory_space<vmem>>, vector<8x128xf32>
      tpu.vector_store %arg5[%c0_22, %c0_23], %39 {strides = array<i32>} : memref<8x128xf32, #tpu.memory_space<vmem>>, vector<8x128xf32>,
    } else {
    }
    %c0_2 = arith.constant 0 : index
    %c0_3 = arith.constant 0 : index
    %c0_4 = arith.constant 0 : index
    %4 = vector.load %arg4[%c0_2, %c0_3, %c0_4] : memref<1x32x128xf32, #tpu.memory_space<vmem>>, vector<1x32x128xf32>
    %5 = vector.shape_cast %4 : vector<1x32x128xf32> to vector<32x128xf32>
    %6 = arith.subf %0, %5 : vector<32x128xf32>
    %cst = arith.constant 9.99999997E-7 : f32
    %7 = vector.broadcast %cst : f32 to vector<32x128xf32>
    %8 = arith.addf %6, %7 : vector<32x128xf32>
    %9 = arith.mulf %8, %8 : vector<32x128xf32>
    %cst_5 = arith.constant dense<0.000000e+00> : vector<128xf32>
    %10 = vector.multi_reduction <add>, %9, %cst_5 [0] : vector<32x128xf32> to vector<128xf32>
    %11 = vector.shape_cast %10 : vector<128xf32> to vector<1x128xf32>
    %12 = math.sqrt %11 : vector<1x128xf32>
    %c0_6 = arith.constant 0 : index
    %c0_7 = arith.constant 0 : index
    %13 = vector.load %arg6[%c0_6, %c0_7] : memref<1x128xf32, #tpu.memory_space<vmem>>, vector<1x128xf32>
    %14 = arith.subf %13, %12 : vector<1x128xf32>
    %cst_8 = arith.constant 1.000000e-01 : f32
    %15 = vector.broadcast %cst_8 : f32 to vector<1x128xf32>
    %16 = arith.addf %14, %15 : vector<1x128xf32>
    %cst_9 = arith.constant 0.000000e+00 : f32
    %17 = vector.broadcast %cst_9 : f32 to vector<1x128xf32>
    %18 = arith.maximumf %16, %17 : vector<1x128xf32>
    %19 = tpu.iota {dimensions = array<i32: 1>} : vector<1x128xi32>
    %c128_i32 = arith.constant 128 : i32
    %20 = arith.muli %arg0, %c128_i32 : i32
    %21 = vector.broadcast %20 : i32 to vector<1x128xi32>
    %22 = arith.addi %21, %19 : vector<1x128xi32>
    %c2_i32 = arith.constant 2 : i32
    %23 = vector.broadcast %c2_i32 : i32 to vector<1x128xi32>
    %24 = arith.cmpi slt, %22, %23 : vector<1x128xi32>
    %cst_10 = arith.constant 0.000000e+00 : f32
    %25 = vector.broadcast %cst_10 : f32 to vector<1x128xf32>
    %26 = arith.select %24, %18, %25 : vector<1x128xi1>, vector<1x128xf32>
    %c0_11 = arith.constant 0 : index
    %c0_12 = arith.constant 0 : index
    %27 = vector.load %arg5[%c0_11, %c0_12] : memref<8x128xf32, #tpu.memory_space<vmem>>, vector<1x128xf32>
    %28 = arith.addf %27, %26 : vector<1x128xf32>
    %c0_13 = arith.constant 0 : index
    %c0_14 = arith.constant 0 : index
    %29 = vector.load %arg5[%c0_13, %c0_14] : memref<8x128xf32, #tpu.memory_space<vmem>>, vector<1x128xf32>
    tpu.vector_store %arg5[%c0_13, %c0_14], %28 {strides = array<i32>} : memref<8x128xf32, #tpu.memory_space<vmem>>, vector<1x128xf32>,
    return
  }
  func.func @transform_0(%arg0: i32, %arg1: i32) -> (i32, i32) {
    %c0_i32 = arith.constant 0 : i32
    %c0_i32_0 = arith.constant 0 : i32
    return %c0_i32, %arg0 : i32, i32
  }
  func.func @transform_1(%arg0: i32, %arg1: i32) -> (i32, i32) {
    %c0_i32 = arith.constant 0 : i32
    %c0_i32_0 = arith.constant 0 : i32
    return %c0_i32, %arg0 : i32, i32
  }
  func.func @transform_2(%arg0: i32, %arg1: i32) -> (i32, i32, i32) {
    %c0_i32 = arith.constant 0 : i32
    %c0_i32_0 = arith.constant 0 : i32
    return %arg1, %c0_i32, %arg0 : i32, i32, i32
  }
  func.func @transform_3(%arg0: i32, %arg1: i32) -> (i32, i32) {
    %c0_i32 = arith.constant 0 : i32
    %c0_i32_0 = arith.constant 0 : i32
    return %c0_i32, %arg0 : i32, i32
  }
}

</mosaic_0001>

<llo_original>
// kernel: tpu_custom_call.1
$region0: #{tpu_custom_call.1}
  #allocation0 [shape = 'u32[]', space=smem, size = 0x4, offset = 0x4, fixed_abs, tag = 'smem constant byte address 0x4 - core index']
  #allocation1 [shape = 'u32[144,128]{1,0:T(1,128)}', space=vmem, size = 0x12000, scoped, tag = 'internal scratch']
  #allocation2 [shape = 'f32[1,128]{1,0:T(1,128)}', space=vmem, size = 0x200, scoped, tag = 'scratch operand']
  %s0 = inlined_call_operand.hbm [shape: f32[32,128], index: 0, kind: input, shape index: {}]
  %s1 = inlined_call_operand.hbm [shape: f32[32,128], index: 1, kind: input, shape index: {}]
  %s2 = inlined_call_operand.hbm [shape: f32[3,32,128], index: 2, kind: input, shape index: {}]
  %s3 = inlined_call_operand.hbm [shape: f32[8,128], index: 3, kind: output, shape index: {}]
  %s4 = sld [smem:[#allocation0]]
  $region61: #{tpu_custom_call.1} parent=0
    _
  %s6 = ssub.s32 1, %s4
  %s7 = scalar_select 0, %s6, %s4
  $region1: #{tpu_custom_call.1} parent=0
    #allocation3 [shape = 'u8[16384]{0}', space=vmem, size = 0x4000, scoped, tag = 'input window, operand 0, single buffered']
    #allocation4 [shape = 's32[2]{0}', space=sflag, size = 0x8, scoped, tag = 'scoped memory for tpu_custom_call.1']
    #allocation5 [shape = 's32[2]{0}', space=sflag, size = 0x8, scoped, tag = 'scoped memory for tpu_custom_call.1']
    #allocation6 [shape = 'u8[16384]{0}', space=vmem, size = 0x4000, scoped, tag = 'input window, operand 1, single buffered']
    #allocation7 [shape = 's32[1]{0}', space=sflag, size = 0x4, scoped, tag = 'scoped memory for tpu_custom_call.1']
    #allocation8 [shape = 'u8[32768]{0}', space=vmem, size = 0x8000, scoped, tag = 'input window, operand 2']
    #allocation9 [shape = 'u8[4096]{0}', space=vmem, size = 0x1000, scoped, tag = 'output window, operand 0, single buffered']
    %8 = vsyncpa [#allocation4], 0
    %9 = vsyncpa [#allocation7], 0
    %10 = vsyncpa [#allocation5], 0
    loop: start=0, step=1, limit=5
    $region2: #{tpu_custom_call.1} parent=1 // loop_pre_header
      _
    $region3: #{tpu_custom_call.1} parent=1 // loop_header
      %s12 = sphi 0, %s16
      %p13 = scmp.ge.s32.totalorder %s12, 5
      %s19 = sphi 0, %s31
      %s20 = sphi 0, %s27
      %s21 = sphi 0, %s19
      %s22 = sphi 0, %s20
      %s23 = sphi 0, %s21
      %s24 = sphi 0, %s22
      %s34 = sphi 0, %s36
      %s37 = sphi 0, %s34
      %s38 = sphi 0, %s37
      %s54 = sphi 0, %s38
      %s60 = sphi 0, %s62
      %s63 = sphi 0, %s60
      %s64 = sphi 0, %s63
      %s80 = sphi 0, %s64
      %s88 = sphi 0, %s90
      %s91 = sphi 0, %s88
      %s92 = sphi 0, %s91
      %s108 = sphi 0, %s92
      %s114 = sphi 0, %s116
      %s117 = sphi 0, %s114
      %s118 = sphi 0, %s117
      %s134 = sphi 0, %s118
    $region4: #{tpu_custom_call.1} parent=1 // loop_header_branch
      %15 = sbr.rel (%p13) target = $region8
    $region5: #{tpu_custom_call.1} parent=1 // loop_body
      %s17 = ssub.s32 %s12, 1
      %s18 = ssub.s32 %s12, 2
      %s25 = sadd.s32 1, %s20
      %p26 = scmp.ge.s32.totalorder %s25, 3
      %s27 = scalar_select %p26, 0, %s25
      %s28 = sadd.s32 1, %s19
      %s29 = scalar_select %p26, %s28, %s19
      %p30 = scmp.ge.s32.totalorder %s29, 1
      %s31 = scalar_select %p30, 0, %s29
      %s32 = ssub.s32 %s19, %s31
      %p33 = scmp.eq.s32.totalorder %s32, 0
      %s35 = sadd.s32 %s34, 1
      %s36 = scalar_select %p33, %s34, %s35
      %p39 = pneg %p33
      %p40 = scmp.eq.s32.totalorder %s12, 2
      %p41 = por %p39, %p40
      %p42 = scmp.ne.s32.totalorder %s34, %s37
      %p43 = scmp.eq.s32.totalorder %s12, 0
      %p44 = por %p42, %p43
      %p45 = scmp.ne.s32.totalorder %s34, %s37
      %p46 = scmp.eq.s32.totalorder %s17, 2
      %p47 = por %p45, %p46
      %p48 = scmp.ne.s32.totalorder %s37, %s38
      %p49 = scmp.eq.s32.totalorder %s17, 0
      %p50 = por %p48, %p49
      %p51 = scmp.ne.s32.totalorder %s37, %s38
      %p52 = scmp.eq.s32.totalorder %s18, 2
      %p53 = por %p51, %p52
      %p55 = scmp.ne.s32.totalorder %s38, %s54
      %p56 = scmp.eq.s32.totalorder %s18, 0
      %p57 = por %p55, %p56
      %s58 = ssub.s32 %s19, %s31
      %p59 = scmp.eq.s32.totalorder %s58, 0
      %s61 = sadd.s32 %s60, 1
      %s62 = scalar_select %p59, %s60, %s61
      %p65 = pneg %p59
      %p66 = scmp.eq.s32.totalorder %s12, 2
      %p67 = por %p65, %p66
      %p68 = scmp.ne.s32.totalorder %s60, %s63
      %p69 = scmp.eq.s32.totalorder %s12, 0
      %p70 = por %p68, %p69
      %p71 = scmp.ne.s32.totalorder %s60, %s63
      %p72 = scmp.eq.s32.totalorder %s17, 2
      %p73 = por %p71, %p72
      %p74 = scmp.ne.s32.totalorder %s63, %s64
      %p75 = scmp.eq.s32.totalorder %s17, 0
      %p76 = por %p74, %p75
      %p77 = scmp.ne.s32.totalorder %s63, %s64
      %p78 = scmp.eq.s32.totalorder %s18, 2
      %p79 = por %p77, %p78
      %p81 = scmp.ne.s32.totalorder %s64, %s80
      %p82 = scmp.eq.s32.totalorder %s18, 0
      %p83 = por %p81, %p82
      %s84 = ssub.s32 %s20, %s27
      %s85 = ssub.s32 %s19, %s31
      %s86 = sor.u32 %s84, %s85
      %p87 = scmp.eq.s32.totalorder %s86, 0
      %s89 = sadd.s32 %s88, 1
      %s90 = scalar_select %p87, %s88, %s89
      %p93 = pneg %p87
      %p94 = scmp.eq.s32.totalorder %s12, 2
      %p95 = por %p93, %p94
      %p96 = scmp.ne.s32.totalorder %s88, %s91
      %p97 = scmp.eq.s32.totalorder %s12, 0
      %p98 = por %p96, %p97
      %p99 = scmp.ne.s32.totalorder %s88, %s91
      %p100 = scmp.eq.s32.totalorder %s17, 2
      %p101 = por %p99, %p100
      %p102 = scmp.ne.s32.totalorder %s91, %s92
      %p103 = scmp.eq.s32.totalorder %s17, 0
      %p104 = por %p102, %p103
      %p105 = scmp.ne.s32.totalorder %s91, %s92
      %p106 = scmp.eq.s32.totalorder %s18, 2
      %p107 = por %p105, %p106
      %p109 = scmp.ne.s32.totalorder %s92, %s108
      %p110 = scmp.eq.s32.totalorder %s18, 0
      %p111 = por %p109, %p110
      %s112 = ssub.s32 %s19, %s31
      %p113 = scmp.eq.s32.totalorder %s112, 0
      %s115 = sadd.s32 %s114, 1
      %s116 = scalar_select %p113, %s114, %s115
      %p119 = pneg %p113
      %p120 = scmp.eq.s32.totalorder %s12, 2
      %p121 = por %p119, %p120
      %p122 = scmp.ne.s32.totalorder %s114, %s117
      %p123 = scmp.eq.s32.totalorder %s12, 0
      %p124 = por %p122, %p123
      %p125 = scmp.ne.s32.totalorder %s114, %s117
      %p126 = scmp.eq.s32.totalorder %s17, 2
      %p127 = por %p125, %p126
      %p128 = scmp.ne.s32.totalorder %s117, %s118
      %p129 = scmp.eq.s32.totalorder %s17, 0
      %p130 = por %p128, %p129
      %p131 = scmp.ne.s32.totalorder %s117, %s118
      %p132 = scmp.eq.s32.totalorder %s18, 2
      %p133 = por %p131, %p132
      %p135 = scmp.ne.s32.totalorder %s118, %s134
      %p136 = scmp.eq.s32.totalorder %s18, 0
      %p137 = por %p135, %p136
      %p138 = scmp.le.s32.totalorder 1, %s12
      %p139 = scmp.lt.s32.totalorder %s12, 4
      %p140 = pnand %p138, %p139
      %p141 = pneg %p140
      // Predicated region
      $region9: #{tpu_custom_call.1} parent=5 // pred_check
        _
      $region10: #{tpu_custom_call.1} parent=5 // pred_check_branch
        %143 = sbr.rel (%p140) target = $region12
      $region11: #{tpu_custom_call.1} parent=5 // pred_region
        %s144 = ssub.s32 %s12, 1
        // Predicated region
        $region13: #{tpu_custom_call.1} parent=11 // pred_check
          %p145 = pneg %p50
        $region14: #{tpu_custom_call.1} parent=11 // pred_check_branch
          %147 = sbr.rel (%p145) target = $region16
        $region15: #{tpu_custom_call.1} parent=11 // pred_region
          %s149 = ssub.s32 512, 512
          %150 = vsyncadd [#allocation4], %s149
          %s151 = smul.addr %s21, 128
          %s152 = scalar_lea.hbm %s0, %s151
          %s153 = sshll.u32 [#allocation3], 4
          %s154 = int_to_ptr.vmem [resolvable:$true] %s153
          %159 = dma.hbm_to_vmem [thread:$0]  %s152, 512, %s154, [#allocation4], 128, 128, 8
        $region16: #{tpu_custom_call.1} parent=11 // pred_fallthru
          _
        // Predicated region
        $region17: #{tpu_custom_call.1} parent=11 // pred_check
          %p160 = pneg %p76
        $region18: #{tpu_custom_call.1} parent=11 // pred_check_branch
          %162 = sbr.rel (%p160) target = $region20
        $region19: #{tpu_custom_call.1} parent=11 // pred_region
          %s164 = ssub.s32 512, 512
          %165 = vsyncadd [#allocation7], %s164
          %s166 = smul.addr %s21, 128
          %s167 = scalar_lea.hbm %s1, %s166
          %s168 = sshll.u32 [#allocation6], 4
          %s169 = int_to_ptr.vmem [resolvable:$true] %s168
          %174 = dma.hbm_to_vmem [thread:$0]  %s167, 512, %s169, [#allocation7], 128, 128, 8
        $region20: #{tpu_custom_call.1} parent=11 // pred_fallthru
          _
      $region12: #{tpu_custom_call.1} parent=5 // pred_fallthru
        _
      %p175 = scmp.lt.s32.totalorder %s12, 3
      // Predicated region
      $region21: #{tpu_custom_call.1} parent=5 // pred_check
        %p176 = pneg %p175
      $region22: #{tpu_custom_call.1} parent=5 // pred_check_branch
        %178 = sbr.rel (%p176) target = $region24
      $region23: #{tpu_custom_call.1} parent=5 // pred_region
        // Predicated region
        $region25: #{tpu_custom_call.1} parent=23 // pred_check
          %p179 = pneg %p98
        $region26: #{tpu_custom_call.1} parent=23 // pred_check_branch
          %181 = sbr.rel (%p179) target = $region28
        $region27: #{tpu_custom_call.1} parent=23 // pred_region
          %s182 = sand.u32 %s12, 1
          %s183 = scalar_lea.sflag [#allocation4], %s182
          %s184 = sand.u32 %s88, 1
          %s185 = smul.addr %s184, 32
          %s186 = scalar_lea.vmem [#allocation8], %s185
          %s188 = ssub.s32 512, 512
          %189 = vsyncadd %s183, %s188
          %s190 = smul.addr %s20, 4
          %s191 = sadd.s32 %s19, %s190
          %s192 = smul.addr %s191, 128
          %s193 = scalar_lea.hbm %s2, %s192
          %s194 = sshll.u32 %s186, 4
          %s195 = int_to_ptr.vmem [resolvable:$true] %s194
          %200 = dma.hbm_to_vmem [thread:$0]  %s193, 512, %s195, %s183, 128, 128, 8
        $region28: #{tpu_custom_call.1} parent=23 // pred_fallthru
          _
      $region24: #{tpu_custom_call.1} parent=5 // pred_fallthru
        _
      %p201 = scmp.le.s32.totalorder 1, %s12
      %p202 = scmp.lt.s32.totalorder %s12, 4
      %p203 = pnand %p201, %p202
      %p204 = pneg %p203
      // Predicated region
      $region29: #{tpu_custom_call.1} parent=5 // pred_check
        _
      $region30: #{tpu_custom_call.1} parent=5 // pred_check_branch
        %206 = sbr.rel (%p203) target = $region32
      $region31: #{tpu_custom_call.1} parent=5 // pred_region
        %s207 = ssub.s32 %s12, 1
        // Predicated region
        $region33: #{tpu_custom_call.1} parent=31 // pred_check
          %p208 = pneg %p50
        $region34: #{tpu_custom_call.1} parent=31 // pred_check_branch
          %210 = sbr.rel (%p208) target = $region36
        $region35: #{tpu_custom_call.1} parent=31 // pred_region
          %211 = dma.done [#allocation4], 512
        $region36: #{tpu_custom_call.1} parent=31 // pred_fallthru
          _
        // Predicated region
        $region37: #{tpu_custom_call.1} parent=31 // pred_check
          %p212 = pneg %p76
        $region38: #{tpu_custom_call.1} parent=31 // pred_check_branch
          %214 = sbr.rel (%p212) target = $region40
        $region39: #{tpu_custom_call.1} parent=31 // pred_region
          %215 = dma.done [#allocation7], 512
        $region40: #{tpu_custom_call.1} parent=31 // pred_fallthru
          _
        %s216 = sand.u32 %s17, 1
        %s217 = scalar_lea.sflag [#allocation4], %s216
        %s218 = sand.u32 %s91, 1
        %s219 = smul.addr %s218, 32
        %s220 = scalar_lea.vmem [#allocation8], %s219
        // Predicated region
        $region41: #{tpu_custom_call.1} parent=31 // pred_check
          %p221 = pneg %p104
        $region42: #{tpu_custom_call.1} parent=31 // pred_check_branch
          %223 = sbr.rel (%p221) target = $region44
        $region43: #{tpu_custom_call.1} parent=31 // pred_region
          %224 = dma.done %s217, 512
        $region44: #{tpu_custom_call.1} parent=31 // pred_fallthru
          _
        %p225 = pneg %p50
        %p226 = pneg %p47
        %p227 = pneg %p76
        %p228 = pneg %p73
        %s229 = sand.u32 %s17, 1
        %s230 = scalar_lea.sflag [#allocation4], %s229
        %s231 = sand.u32 %s91, 1
        %s232 = smul.addr %s231, 32
        %s233 = scalar_lea.vmem [#allocation8], %s232
        %p234 = pneg %p104
        %p235 = pneg %p101
        %p236 = pneg %p130
        %p237 = pneg %p127
        %v238 = vld [vmem:[#allocation3] sm:$0xff]
        %v239 = vld [vmem:[#allocation3 + $0x8] sm:$0xff]
        %v240 = vld [vmem:[#allocation3 + $0x10] sm:$0xff]
        %v241 = vld [vmem:[#allocation3 + $0x18] sm:$0xff]
        %p242 = scmp.eq.s32.totalorder %s22, 0
        // Predicated region
        $region45: #{tpu_custom_call.1} parent=31 // pred_check
          %p243 = pneg %p242
        $region46: #{tpu_custom_call.1} parent=31 // pred_check_branch
          %245 = sbr.rel (%p243) target = $region48
        $region47: #{tpu_custom_call.1} parent=31 // pred_region
          %v246 = vld [vmem:[#allocation6] sm:$0xff]
          %v247 = vld [vmem:[#allocation6 + $0x8] sm:$0xff]
          %v248 = vld [vmem:[#allocation6 + $0x10] sm:$0xff]
          %v249 = vld [vmem:[#allocation6 + $0x18] sm:$0xff]
          %v250 = vsub.f32 %v238, %v246
          %v251 = vsub.f32 %v239, %v247
          %v252 = vsub.f32 %v240, %v248
          %v253 = vsub.f32 %v241, %v249
          %v254 = vadd.f32 %v250, 1e-06
          %v255 = vadd.f32 %v251, 1e-06
          %v256 = vadd.f32 %v252, 1e-06
          %v257 = vadd.f32 %v253, 1e-06
          %v258 = vmul.f32 %v254, %v254
          %v259 = vmul.f32 %v255, %v255
          %v260 = vmul.f32 %v256, %v256
          %v261 = vmul.f32 %v257, %v257
          %v262 = vadd.f32 %v258, %v259
          %v263 = vadd.f32 %v262, %v260
          %v264 = vadd.f32 %v263, %v261
          %v265 = vrot.slane %v264, 4
          %v266 = vadd.f32 %v264, %v265
          %v267 = vrot.slane %v266, 2
          %v268 = vadd.f32 %v266, %v267
          %v269 = vrot.slane %v268, 1
          %v270 = vadd.f32 %v268, %v269
          %v271 = vrsqrt.pop %v270
          %v272 = vmul.f32 %v270, %v271
          %vm273 = vcmp.eq.f32.partialorder %v270, inf
          %v274 = vsel %vm273, %v270, %v272
          %vm275 = vcmp.eq.f32.partialorder %v270, 0.0
          %v276 = vand.u32 %v270, 2147483648
          %v277 = vsel %vm275, %v276, %v274
          %278 = vst [vmem:[#allocation2] sm:$0x1] %v277
          %279 = vst [vmem:[#allocation9] sm:$0xff] 0.0
        $region48: #{tpu_custom_call.1} parent=31 // pred_fallthru
          _
        %v280 = vld [vmem:[%s220] sm:$0xff]
        %v281 = vld [vmem:[%s220 + $0x8] sm:$0xff]
        %v282 = vld [vmem:[%s220 + $0x10] sm:$0xff]
        %v283 = vld [vmem:[%s220 + $0x18] sm:$0xff]
        %v284 = vsub.f32 %v238, %v280
        %v285 = vsub.f32 %v239, %v281
        %v286 = vsub.f32 %v240, %v282
        %v287 = vsub.f32 %v241, %v283
        %v288 = vadd.f32 %v284, 1e-06
        %v289 = vadd.f32 %v285, 1e-06
        %v290 = vadd.f32 %v286, 1e-06
        %v291 = vadd.f32 %v287, 1e-06
        %v292 = vmul.f32 %v288, %v288
        %v293 = vmul.f32 %v289, %v289
        %v294 = vmul.f32 %v290, %v290
        %v295 = vmul.f32 %v291, %v291
        %v296 = vadd.f32 %v292, %v293
        %v297 = vadd.f32 %v296, %v294
        %v298 = vadd.f32 %v297, %v295
        %v299 = vrot.slane %v298, 4
        %v300 = vadd.f32 %v298, %v299
        %v301 = vrot.slane %v300, 2
        %v302 = vadd.f32 %v300, %v301
        %v303 = vrot.slane %v302, 1
        %v304 = vadd.f32 %v302, %v303
        %v305 = vrsqrt.pop %v304
        %v306 = vmul.f32 %v304, %v305
        %vm307 = vcmp.eq.f32.partialorder %v304, inf
        %v308 = vsel %vm307, %v304, %v306
        %vm309 = vcmp.eq.f32.partialorder %v304, 0.0
        %v310 = vand.u32 %v304, 2147483648
        %v311 = vsel %vm309, %v310, %v308
        %v312 = vld [vmem:[#allocation2] sm:$0x1]
        %v313 = vsub.f32 %v312, %v311
        %v314 = vadd.f32 %v313, 0.1
        %v315 = vmax.f32 %v314, 0.0
        %v316 = vlaneseq
        %v317 = vand.u32 %v316, 127
        %s318 = smul.u32 %s21, 128
        %v319 = vstv %s318
        %v320 = vadd.s32 %v319, %v317
        %vm321 = vcmp.lt.s32.totalorder %v320, 2
        %v322 = vsel %vm321, %v315, 0.0
        %v323 = vld [vmem:[#allocation9] sm:$0x1]
        %v324 = vadd.f32 %v323, %v322
        %325 = vst [vmem:[#allocation9] sm:$0x1] %v324
        // Predicated region
        $region49: #{tpu_custom_call.1} parent=31 // pred_check
          %p326 = pneg %p127
        $region50: #{tpu_custom_call.1} parent=31 // pred_check_branch
          %328 = sbr.rel (%p326) target = $region52
        $region51: #{tpu_custom_call.1} parent=31 // pred_region
          %s330 = ssub.s32 128, 128
          %331 = vsyncadd [#allocation5], %s330
          %s332 = smul.addr %s21, 128
          %s333 = scalar_lea.hbm %s3, %s332
          %s335 = sshll.u32 [#allocation9], 4
          %s336 = int_to_ptr.vmem [resolvable:$true] %s335
          %338 = dma.vmem_to_hbm [thread:$0]  %s336, 128, %s333, [#allocation5]
        $region52: #{tpu_custom_call.1} parent=31 // pred_fallthru
          _
        // Predicated region
        $region53: #{tpu_custom_call.1} parent=31 // pred_check
          %p339 = pneg %p127
        $region54: #{tpu_custom_call.1} parent=31 // pred_check_branch
          %341 = sbr.rel (%p339) target = $region56
        $region55: #{tpu_custom_call.1} parent=31 // pred_region
          %342 = dma.done [#allocation5], 128
        $region56: #{tpu_custom_call.1} parent=31 // pred_fallthru
          _
      $region32: #{tpu_custom_call.1} parent=5 // pred_fallthru
        _
      %p343 = scmp.le.s32.totalorder 2, %s12
      // Predicated region
      $region57: #{tpu_custom_call.1} parent=5 // pred_check
        %p344 = pneg %p343
      $region58: #{tpu_custom_call.1} parent=5 // pred_check_branch
        %346 = sbr.rel (%p344) target = $region60
      $region59: #{tpu_custom_call.1} parent=5 // pred_region
        %s347 = ssub.s32 %s12, 2
      $region60: #{tpu_custom_call.1} parent=5 // pred_fallthru
        _
    $region6: #{tpu_custom_call.1} parent=1 // loop_footer
      %s16 = sadd.s32 1, %s12
    $region7: #{tpu_custom_call.1} parent=1 // loop_footer_branch
      %11 = sbr.rel target = $region3
    $region8: #{tpu_custom_call.1} parent=1 // loop_exit
      _
    %348 = vsyncpa [#allocation4], 1
    %s349 = scalar_lea.sflag [#allocation4], 1
    %350 = vsyncpa %s349, 1
    %351 = vsyncpa [#allocation7], 1
    %352 = vsyncpa [#allocation5], 1
    %s353 = scalar_lea.sflag [#allocation5], 1
    %354 = vsyncpa %s353, 1

</llo_original>
